<compile_context>
chip_gen: v7x
topology: tpu7x:2x2x1
jax: 0.10.0
libtpu: 0.0.40
codegen_flags: <defaults>
</compile_context>

<pallas_src>
import jax
import jax.numpy as jnp
from jax.experimental import pallas as pl
from jax.experimental.pallas import tpu as pltpu


def rnn_fused_kernel(emb_ref, img_ref, h0_ref, wh_ref, we_ref, wi_ref, b_ref,
                     wo_ref, bo_ref, logits_ref, hout_ref, hx_scr):
    """Whole-sequence RNN forward in a single invocation (all VMEM-resident)."""
    seq, batch, hidden = hx_scr.shape
    vocab = logits_ref.shape[-1]
    cdt = wh_ref.dtype            # MXU-operand dtype (f32 here; bf16 on v6e/v7x)

    # (1) Non-recurrent projection, hoisted off the serial chain:
    #     X[t] = emb_t @ We + (imgfeat @ Wi + b)  — one big MXU matmul + one small one.
    const = (jnp.dot(img_ref[...], wi_ref[...], preferred_element_type=jnp.float32)
             + b_ref[...])                                        # (batch, hidden) f32
    x_proj = jnp.dot(emb_ref[...], we_ref[...],
                     preferred_element_type=jnp.float32)          # (seq*batch, hidden)
    hx_scr[...] = x_proj.reshape(seq, batch, hidden) + const[None]

    # (2) Serial recurrence.  seq is a trace-time constant, so the loop is fully
    #     unrolled (max LLO scheduling visibility); h stays in vregs as a value and
    #     each h_t overwrites X_t in the same VMEM slab (in-place reuse).
    #     Only h @ Wh + add + tanh sits on the h_{t-1} -> h_t dependency chain.
    wh = wh_ref[...]
    h = h0_ref[...].astype(jnp.float32)
    for t in range(seq):
        acc = jnp.dot(h.astype(cdt), wh, preferred_element_type=jnp.float32)
        h = jnp.tanh(acc + hx_scr[t])
        hx_scr[t] = h
    h_final = h

    # (3) Deferred output layer: one (seq*batch, hidden) @ (hidden, vocab) matmul
    #     (M = seq*batch for much better MXU fill than per-step M = batch), plus a
    #     single lane-dense writeback of the whole logits slab.
    hs = hx_scr[...].reshape(seq * batch, hidden)
    logits = (jnp.dot(hs.astype(wo_ref.dtype), wo_ref[...],
                      preferred_element_type=jnp.float32)
              + bo_ref[...])
    logits_ref[...] = logits.reshape(seq, batch, vocab).astype(logits_ref.dtype)
    hout_ref[...] = h_final.astype(hout_ref.dtype)


def rnn_onelayer_forward(xTokens, baseimgfeat, initial_hidden_state,
                         weight, bias, emb_table, w_out, b_out,
                         mxu_dtype=jnp.float32):
    """JAX/Pallas equivalent of RNN_onelayer_simplified.forward (is_train=True)."""
    batch, seq = xTokens.shape
    hidden = initial_hidden_state.shape[-1]
    embed = emb_table.shape[1]
    img = baseimgfeat.shape[1]
    vocab = w_out.shape[1]

    # nn.Embedding lookup as a gather outside the kernel, time-major and flattened to
    # one (seq*batch, embed) slab copied into VMEM once (no per-step embedding DMAs).
    # TODO(synk): at production embed/seq sizes, gather embedding rows in-kernel from
    # the table via scalar-prefetched token ids instead of materializing emb_seq in HBM.
    emb_flat = emb_table[xTokens.T].reshape(seq * batch, embed)

    # Split the cell weight along its rows so the kernel never concatenates:
    # x2 = cat([h, emb_t, imgfeat]) @ W  ==  h @ Wh + emb_t @ We + imgfeat @ Wi.
    w_h = weight[:hidden]
    w_e = weight[hidden:hidden + embed]
    w_i = weight[hidden + embed:]
    h0 = initial_hidden_state[0]                                   # (batch, hidden)

    cdt = mxu_dtype
    vmem_full = pl.BlockSpec(memory_space=pltpu.MemorySpace.VMEM)  # whole array, resident

    logits_seq, h_final = pl.pallas_call(
        rnn_fused_kernel,
        out_shape=(
            jax.ShapeDtypeStruct((seq, batch, vocab), jnp.float32),
            jax.ShapeDtypeStruct((batch, hidden), jnp.float32),
        ),
        in_specs=[vmem_full] * 9,
        out_specs=(vmem_full, vmem_full),
        scratch_shapes=[pltpu.VMEM((seq, batch, hidden), jnp.float32)],  # X_t / h_t slab
        compiler_params=pltpu.CompilerParams(vmem_limit_bytes=32 * 1024 * 1024),
        # TODO(synk): for large batch on v7x add a leading "parallel" grid axis over
        # batch tiles (2 TensorCores); for long seq where the logits slab exceeds VMEM,
        # block Tseq timesteps per grid step instead of holding the whole sequence.
    )(emb_flat.astype(cdt), baseimgfeat.astype(cdt), h0,
      w_h.astype(cdt), w_e.astype(cdt), w_i.astype(cdt), bias,
      w_out.astype(cdt), b_out)

    # torch.stack(logits_series, dim=1) -> [batch, seq, vocab]
    logits = jnp.transpose(logits_seq, (1, 0, 2))
    # updatedstate = zeros_like(state); updatedstate[0] = h_new (each step)
    current_state = jnp.zeros_like(initial_hidden_state).at[0].set(h_final)
    return logits, current_state


def reference_forward(xTokens, baseimgfeat, initial_hidden_state,
                      weight, bias, emb_table, w_out, b_out):
    """Pure-JAX transcription of the PyTorch module (is_train=True)."""
    batch, seq = xTokens.shape
    embed_input_vec = emb_table[xTokens]                 # Embedding(xTokens)
    tokens_vector = embed_input_vec[:, 0, :]
    logits_series = []
    current_state = initial_hidden_state
    for kk in range(seq):
        lvl0input = jnp.concatenate([tokens_vector, baseimgfeat], axis=1)
        x2 = jnp.concatenate([current_state[0], lvl0input], axis=1)
        h_new = jnp.tanh(x2 @ weight + bias)
        updatedstate = jnp.zeros_like(current_state).at[0].set(h_new)
        logits_kk = h_new @ w_out + b_out                # outputlayer(...)
        logits_series.append(logits_kk)
        current_state = updatedstate
        if kk < seq - 1:
            tokens_vector = embed_input_vec[:, kk + 1, :]
    logits = jnp.stack(logits_series, axis=1)
    return logits, current_state


if __name__ == "__main__":
    batch = 8            # multiple of 8 -> full sublane occupancy
    seq = 8
    embed = 16           # token embedding width
    img = 16             # baseimgfeat width
    input_size = embed + img          # the cell's "input_size"
    hidden = 32
    vocab = 128          # lane-dense (multiple of 128) logits output

    key = jax.random.PRNGKey(0)
    k_tok, k_img, k_h, k_w, k_emb, k_out = jax.random.split(key, 6)

    # Cell parameters initialised like the module: variance-scaled weight, zero bias.
    n = input_size + hidden
    weight = (jax.random.normal(k_w, (n, hidden), dtype=jnp.float32)
              / jnp.sqrt(jnp.float32(n)))
    bias = jnp.zeros((1, hidden), dtype=jnp.float32)

    # Stand-ins for the Embedding / outputlayer modules passed into forward().
    emb_table = jax.random.normal(k_emb, (vocab, embed), dtype=jnp.float32) * 0.1
    w_out = (jax.random.normal(k_out, (hidden, vocab), dtype=jnp.float32)
             / jnp.sqrt(jnp.float32(hidden)))
    b_out = jnp.zeros((1, vocab), dtype=jnp.float32)

    xTokens = jax.random.randint(k_tok, (batch, seq), 0, vocab, dtype=jnp.int32)
    baseimgfeat = jax.random.normal(k_img, (batch, img), dtype=jnp.float32)
    initial_hidden_state = jax.random.normal(k_h, (1, batch, hidden),
                                             dtype=jnp.float32)

    logits, state = rnn_onelayer_forward(
        xTokens, baseimgfeat, initial_hidden_state,
        weight, bias, emb_table, w_out, b_out)
    logits = jax.block_until_ready(logits)
    state = jax.block_until_ready(state)

    ref_logits, ref_state = reference_forward(
        xTokens, baseimgfeat, initial_hidden_state,
        weight, bias, emb_table, w_out, b_out)

    assert logits.shape == (batch, seq, vocab)
    assert state.shape == (1, batch, hidden)
    assert jnp.allclose(logits, ref_logits, atol=1e-4, rtol=1e-4), (
        float(jnp.max(jnp.abs(logits - ref_logits))))
    assert jnp.allclose(state, ref_state, atol=1e-4, rtol=1e-4), (
        float(jnp.max(jnp.abs(state - ref_state))))

    print("KERNEL_OK")
</pallas_src>

<mosaic_0001>
module attributes {stable_mosaic.version = 11 : i64} {
  func.func @rnn_fused_kernel(%arg0: memref<64x16xf32, #tpu.memory_space<vmem>>, %arg1: memref<8x16xf32, #tpu.memory_space<vmem>>, %arg2: memref<8x32xf32, #tpu.memory_space<vmem>>, %arg3: memref<32x32xf32, #tpu.memory_space<vmem>>, %arg4: memref<16x32xf32, #tpu.memory_space<vmem>>, %arg5: memref<16x32xf32, #tpu.memory_space<vmem>>, %arg6: memref<1x32xf32, #tpu.memory_space<vmem>>, %arg7: memref<32x128xf32, #tpu.memory_space<vmem>>, %arg8: memref<1x128xf32, #tpu.memory_space<vmem>>, %arg9: memref<8x8x128xf32, #tpu.memory_space<vmem>>, %arg10: memref<8x32xf32, #tpu.memory_space<vmem>>, %arg11: memref<8x8x32xf32, #tpu.memory_space<vmem>>) attributes {dimension_semantics = [], scalar_prefetch = 0 : i64, scratch_operands = 1 : i64, tpu.core_type = #tpu.core_type<tc>} {
    %c0 = arith.constant 0 : index
    %c0_0 = arith.constant 0 : index
    %0 = vector.load %arg1[%c0, %c0_0] : memref<8x16xf32, #tpu.memory_space<vmem>>, vector<8x16xf32>
    %c0_1 = arith.constant 0 : index
    %c0_2 = arith.constant 0 : index
    %1 = vector.load %arg5[%c0_1, %c0_2] : memref<16x32xf32, #tpu.memory_space<vmem>>, vector<16x32xf32>
    %cst = arith.constant dense<0.000000e+00> : vector<8x32xf32>
    %2 = tpu.matmul %0, %1, %cst {dimension_numbers = #tpu.dot_dimension_numbers<[1], [0], [0], [1], [0, 0, 1, 1], [], []>} : vector<8x16xf32>, vector<16x32xf32>, vector<8x32xf32> -> vector<8x32xf32>
    %c0_3 = arith.constant 0 : index
    %c0_4 = arith.constant 0 : index
    %3 = vector.load %arg6[%c0_3, %c0_4] : memref<1x32xf32, #tpu.memory_space<vmem>>, vector<1x32xf32>
    %4 = vector.broadcast %3 : vector<1x32xf32> to vector<8x32xf32>
    %5 = arith.addf %2, %4 : vector<8x32xf32>
    %c0_5 = arith.constant 0 : index
    %c0_6 = arith.constant 0 : index
    %6 = vector.load %arg0[%c0_5, %c0_6] : memref<64x16xf32, #tpu.memory_space<vmem>>, vector<64x16xf32>
    %c0_7 = arith.constant 0 : index
    %c0_8 = arith.constant 0 : index
    %7 = vector.load %arg4[%c0_7, %c0_8] : memref<16x32xf32, #tpu.memory_space<vmem>>, vector<16x32xf32>
    %cst_9 = arith.constant dense<0.000000e+00> : vector<64x32xf32>
    %8 = tpu.matmul %6, %7, %cst_9 {dimension_numbers = #tpu.dot_dimension_numbers<[1], [0], [0], [1], [0, 0, 1, 1], [], []>} : vector<64x16xf32>, vector<16x32xf32>, vector<64x32xf32> -> vector<64x32xf32>
    %9 = vector.shape_cast %8 : vector<64x32xf32> to vector<8x8x32xf32>
    %10 = vector.shape_cast %5 : vector<8x32xf32> to vector<1x8x32xf32>
    %11 = vector.broadcast %10 : vector<1x8x32xf32> to vector<8x8x32xf32>
    %12 = arith.addf %9, %11 : vector<8x8x32xf32>
    %c0_10 = arith.constant 0 : index
    %c0_11 = arith.constant 0 : index
    %c0_12 = arith.constant 0 : index
    %13 = vector.load %arg11[%c0_10, %c0_11, %c0_12] : memref<8x8x32xf32, #tpu.memory_space<vmem>>, vector<8x8x32xf32>
    tpu.vector_store %arg11[%c0_10, %c0_11, %c0_12], %12 {strides = array<i32>} : memref<8x8x32xf32, #tpu.memory_space<vmem>>, vector<8x8x32xf32>,
    %c0_13 = arith.constant 0 : index
    %c0_14 = arith.constant 0 : index
    %14 = vector.load %arg3[%c0_13, %c0_14] : memref<32x32xf32, #tpu.memory_space<vmem>>, vector<32x32xf32>
    %c0_15 = arith.constant 0 : index
    %c0_16 = arith.constant 0 : index
    %15 = vector.load %arg2[%c0_15, %c0_16] : memref<8x32xf32, #tpu.memory_space<vmem>>, vector<8x32xf32>
    %cst_17 = arith.constant dense<0.000000e+00> : vector<8x32xf32>
    %16 = tpu.matmul %15, %14, %cst_17 {dimension_numbers = #tpu.dot_dimension_numbers<[1], [0], [0], [1], [0, 0, 1, 1], [], []>} : vector<8x32xf32>, vector<32x32xf32>, vector<8x32xf32> -> vector<8x32xf32>
    %c0_18 = arith.constant 0 : index
    %c0_19 = arith.constant 0 : index
    %c0_20 = arith.constant 0 : index
    %17 = vector.load %arg11[%c0_18, %c0_19, %c0_20] : memref<8x8x32xf32, #tpu.memory_space<vmem>>, vector<1x8x32xf32>
    %18 = vector.shape_cast %17 : vector<1x8x32xf32> to vector<8x32xf32>
    %19 = arith.addf %16, %18 : vector<8x32xf32>
    %20 = math.tanh %19 : vector<8x32xf32>
    %c0_21 = arith.constant 0 : index
    %c0_22 = arith.constant 0 : index
    %c0_23 = arith.constant 0 : index
    %21 = vector.load %arg11[%c0_21, %c0_22, %c0_23] : memref<8x8x32xf32, #tpu.memory_space<vmem>>, vector<1x8x32xf32>
    %22 = vector.shape_cast %21 : vector<1x8x32xf32> to vector<8x32xf32>
    %23 = vector.shape_cast %20 : vector<8x32xf32> to vector<1x8x32xf32>
    tpu.vector_store %arg11[%c0_21, %c0_22, %c0_23], %23 {strides = array<i32>} : memref<8x8x32xf32, #tpu.memory_space<vmem>>, vector<1x8x32xf32>,
    %cst_24 = arith.constant dense<0.000000e+00> : vector<8x32xf32>
    %24 = tpu.matmul %20, %14, %cst_24 {dimension_numbers = #tpu.dot_dimension_numbers<[1], [0], [0], [1], [0, 0, 1, 1], [], []>} : vector<8x32xf32>, vector<32x32xf32>, vector<8x32xf32> -> vector<8x32xf32>
    %c1 = arith.constant 1 : index
    %c0_25 = arith.constant 0 : index
    %c0_26 = arith.constant 0 : index
    %25 = vector.load %arg11[%c1, %c0_25, %c0_26] : memref<8x8x32xf32, #tpu.memory_space<vmem>>, vector<1x8x32xf32>
    %26 = vector.shape_cast %25 : vector<1x8x32xf32> to vector<8x32xf32>
    %27 = arith.addf %24, %26 : vector<8x32xf32>
    %28 = math.tanh %27 : vector<8x32xf32>
    %c1_27 = arith.constant 1 : index
    %c0_28 = arith.constant 0 : index
    %c0_29 = arith.constant 0 : index
    %29 = vector.load %arg11[%c1_27, %c0_28, %c0_29] : memref<8x8x32xf32, #tpu.memory_space<vmem>>, vector<1x8x32xf32>
    %30 = vector.shape_cast %29 : vector<1x8x32xf32> to vector<8x32xf32>
    %31 = vector.shape_cast %28 : vector<8x32xf32> to vector<1x8x32xf32>
    tpu.vector_store %arg11[%c1_27, %c0_28, %c0_29], %31 {strides = array<i32>} : memref<8x8x32xf32, #tpu.memory_space<vmem>>, vector<1x8x32xf32>,
    %cst_30 = arith.constant dense<0.000000e+00> : vector<8x32xf32>
    %32 = tpu.matmul %28, %14, %cst_30 {dimension_numbers = #tpu.dot_dimension_numbers<[1], [0], [0], [1], [0, 0, 1, 1], [], []>} : vector<8x32xf32>, vector<32x32xf32>, vector<8x32xf32> -> vector<8x32xf32>
    %c2 = arith.constant 2 : index
    %c0_31 = arith.constant 0 : index
    %c0_32 = arith.constant 0 : index
    %33 = vector.load %arg11[%c2, %c0_31, %c0_32] : memref<8x8x32xf32, #tpu.memory_space<vmem>>, vector<1x8x32xf32>
    %34 = vector.shape_cast %33 : vector<1x8x32xf32> to vector<8x32xf32>
    %35 = arith.addf %32, %34 : vector<8x32xf32>
    %36 = math.tanh %35 : vector<8x32xf32>
    %c2_33 = arith.constant 2 : index
    %c0_34 = arith.constant 0 : index
    %c0_35 = arith.constant 0 : index
    %37 = vector.load %arg11[%c2_33, %c0_34, %c0_35] : memref<8x8x32xf32, #tpu.memory_space<vmem>>, vector<1x8x32xf32>
    %38 = vector.shape_cast %37 : vector<1x8x32xf32> to vector<8x32xf32>
    %39 = vector.shape_cast %36 : vector<8x32xf32> to vector<1x8x32xf32>
    tpu.vector_store %arg11[%c2_33, %c0_34, %c0_35], %39 {strides = array<i32>} : memref<8x8x32xf32, #tpu.memory_space<vmem>>, vector<1x8x32xf32>,
    %cst_36 = arith.constant dense<0.000000e+00> : vector<8x32xf32>
    %40 = tpu.matmul %36, %14, %cst_36 {dimension_numbers = #tpu.dot_dimension_numbers<[1], [0], [0], [1], [0, 0, 1, 1], [], []>} : vector<8x32xf32>, vector<32x32xf32>, vector<8x32xf32> -> vector<8x32xf32>
    %c3 = arith.constant 3 : index
    %c0_37 = arith.constant 0 : index
    %c0_38 = arith.constant 0 : index
    %41 = vector.load %arg11[%c3, %c0_37, %c0_38] : memref<8x8x32xf32, #tpu.memory_space<vmem>>, vector<1x8x32xf32>
    %42 = vector.shape_cast %41 : vector<1x8x32xf32> to vector<8x32xf32>
    %43 = arith.addf %40, %42 : vector<8x32xf32>
    %44 = math.tanh %43 : vector<8x32xf32>
    %c3_39 = arith.constant 3 : index
    %c0_40 = arith.constant 0 : index
    %c0_41 = arith.constant 0 : index
    %45 = vector.load %arg11[%c3_39, %c0_40, %c0_41] : memref<8x8x32xf32, #tpu.memory_space<vmem>>, vector<1x8x32xf32>
    %46 = vector.shape_cast %45 : vector<1x8x32xf32> to vector<8x32xf32>
    %47 = vector.shape_cast %44 : vector<8x32xf32> to vector<1x8x32xf32>
    tpu.vector_store %arg11[%c3_39, %c0_40, %c0_41], %47 {strides = array<i32>} : memref<8x8x32xf32, #tpu.memory_space<vmem>>, vector<1x8x32xf32>,
    %cst_42 = arith.constant dense<0.000000e+00> : vector<8x32xf32>
    %48 = tpu.matmul %44, %14, %cst_42 {dimension_numbers = #tpu.dot_dimension_numbers<[1], [0], [0], [1], [0, 0, 1, 1], [], []>} : vector<8x32xf32>, vector<32x32xf32>, vector<8x32xf32> -> vector<8x32xf32>
    %c4 = arith.constant 4 : index
    %c0_43 = arith.constant 0 : index
    %c0_44 = arith.constant 0 : index
    %49 = vector.load %arg11[%c4, %c0_43, %c0_44] : memref<8x8x32xf32, #tpu.memory_space<vmem>>, vector<1x8x32xf32>
    %50 = vector.shape_cast %49 : vector<1x8x32xf32> to vector<8x32xf32>
    %51 = arith.addf %48, %50 : vector<8x32xf32>
    %52 = math.tanh %51 : vector<8x32xf32>
    %c4_45 = arith.constant 4 : index
    %c0_46 = arith.constant 0 : index
    %c0_47 = arith.constant 0 : index
    %53 = vector.load %arg11[%c4_45, %c0_46, %c0_47] : memref<8x8x32xf32, #tpu.memory_space<vmem>>, vector<1x8x32xf32>
    %54 = vector.shape_cast %53 : vector<1x8x32xf32> to vector<8x32xf32>
    %55 = vector.shape_cast %52 : vector<8x32xf32> to vector<1x8x32xf32>
    tpu.vector_store %arg11[%c4_45, %c0_46, %c0_47], %55 {strides = array<i32>} : memref<8x8x32xf32, #tpu.memory_space<vmem>>, vector<1x8x32xf32>,
    %cst_48 = arith.constant dense<0.000000e+00> : vector<8x32xf32>
    %56 = tpu.matmul %52, %14, %cst_48 {dimension_numbers = #tpu.dot_dimension_numbers<[1], [0], [0], [1], [0, 0, 1, 1], [], []>} : vector<8x32xf32>, vector<32x32xf32>, vector<8x32xf32> -> vector<8x32xf32>
    %c5 = arith.constant 5 : index
    %c0_49 = arith.constant 0 : index
    %c0_50 = arith.constant 0 : index
    %57 = vector.load %arg11[%c5, %c0_49, %c0_50] : memref<8x8x32xf32, #tpu.memory_space<vmem>>, vector<1x8x32xf32>
    %58 = vector.shape_cast %57 : vector<1x8x32xf32> to vector<8x32xf32>
    %59 = arith.addf %56, %58 : vector<8x32xf32>
    %60 = math.tanh %59 : vector<8x32xf32>
    %c5_51 = arith.constant 5 : index
    %c0_52 = arith.constant 0 : index
    %c0_53 = arith.constant 0 : index
    %61 = vector.load %arg11[%c5_51, %c0_52, %c0_53] : memref<8x8x32xf32, #tpu.memory_space<vmem>>, vector<1x8x32xf32>
    %62 = vector.shape_cast %61 : vector<1x8x32xf32> to vector<8x32xf32>
    %63 = vector.shape_cast %60 : vector<8x32xf32> to vector<1x8x32xf32>
    tpu.vector_store %arg11[%c5_51, %c0_52, %c0_53], %63 {strides = array<i32>} : memref<8x8x32xf32, #tpu.memory_space<vmem>>, vector<1x8x32xf32>,
    %cst_54 = arith.constant dense<0.000000e+00> : vector<8x32xf32>
    %64 = tpu.matmul %60, %14, %cst_54 {dimension_numbers = #tpu.dot_dimension_numbers<[1], [0], [0], [1], [0, 0, 1, 1], [], []>} : vector<8x32xf32>, vector<32x32xf32>, vector<8x32xf32> -> vector<8x32xf32>
    %c6 = arith.constant 6 : index
    %c0_55 = arith.constant 0 : index
    %c0_56 = arith.constant 0 : index
    %65 = vector.load %arg11[%c6, %c0_55, %c0_56] : memref<8x8x32xf32, #tpu.memory_space<vmem>>, vector<1x8x32xf32>
    %66 = vector.shape_cast %65 : vector<1x8x32xf32> to vector<8x32xf32>
    %67 = arith.addf %64, %66 : vector<8x32xf32>
    %68 = math.tanh %67 : vector<8x32xf32>
    %c6_57 = arith.constant 6 : index
    %c0_58 = arith.constant 0 : index
    %c0_59 = arith.constant 0 : index
    %69 = vector.load %arg11[%c6_57, %c0_58, %c0_59] : memref<8x8x32xf32, #tpu.memory_space<vmem>>, vector<1x8x32xf32>
    %70 = vector.shape_cast %69 : vector<1x8x32xf32> to vector<8x32xf32>
    %71 = vector.shape_cast %68 : vector<8x32xf32> to vector<1x8x32xf32>
    tpu.vector_store %arg11[%c6_57, %c0_58, %c0_59], %71 {strides = array<i32>} : memref<8x8x32xf32, #tpu.memory_space<vmem>>, vector<1x8x32xf32>,
    %cst_60 = arith.constant dense<0.000000e+00> : vector<8x32xf32>
    %72 = tpu.matmul %68, %14, %cst_60 {dimension_numbers = #tpu.dot_dimension_numbers<[1], [0], [0], [1], [0, 0, 1, 1], [], []>} : vector<8x32xf32>, vector<32x32xf32>, vector<8x32xf32> -> vector<8x32xf32>
    %c7 = arith.constant 7 : index
    %c0_61 = arith.constant 0 : index
    %c0_62 = arith.constant 0 : index
    %73 = vector.load %arg11[%c7, %c0_61, %c0_62] : memref<8x8x32xf32, #tpu.memory_space<vmem>>, vector<1x8x32xf32>
    %74 = vector.shape_cast %73 : vector<1x8x32xf32> to vector<8x32xf32>
    %75 = arith.addf %72, %74 : vector<8x32xf32>
    %76 = math.tanh %75 : vector<8x32xf32>
    %c7_63 = arith.constant 7 : index
    %c0_64 = arith.constant 0 : index
    %c0_65 = arith.constant 0 : index
    %77 = vector.load %arg11[%c7_63, %c0_64, %c0_65] : memref<8x8x32xf32, #tpu.memory_space<vmem>>, vector<1x8x32xf32>
    %78 = vector.shape_cast %77 : vector<1x8x32xf32> to vector<8x32xf32>
    %79 = vector.shape_cast %76 : vector<8x32xf32> to vector<1x8x32xf32>
    tpu.vector_store %arg11[%c7_63, %c0_64, %c0_65], %79 {strides = array<i32>} : memref<8x8x32xf32, #tpu.memory_space<vmem>>, vector<1x8x32xf32>,
    %c0_66 = arith.constant 0 : index
    %c0_67 = arith.constant 0 : index
    %c0_68 = arith.constant 0 : index
    %80 = vector.load %arg11[%c0_66, %c0_67, %c0_68] : memref<8x8x32xf32, #tpu.memory_space<vmem>>, vector<8x8x32xf32>
    %81 = vector.shape_cast %80 : vector<8x8x32xf32> to vector<64x32xf32>
    %c0_69 = arith.constant 0 : index
    %c0_70 = arith.constant 0 : index
    %82 = vector.load %arg7[%c0_69, %c0_70] : memref<32x128xf32, #tpu.memory_space<vmem>>, vector<32x128xf32>
    %cst_71 = arith.constant dense<0.000000e+00> : vector<64x128xf32>
    %83 = tpu.matmul %81, %82, %cst_71 {dimension_numbers = #tpu.dot_dimension_numbers<[1], [0], [0], [1], [0, 0, 1, 1], [], []>} : vector<64x32xf32>, vector<32x128xf32>, vector<64x128xf32> -> vector<64x128xf32>
    %c0_72 = arith.constant 0 : index
    %c0_73 = arith.constant 0 : index
    %84 = vector.load %arg8[%c0_72, %c0_73] : memref<1x128xf32, #tpu.memory_space<vmem>>, vector<1x128xf32>
    %85 = vector.broadcast %84 : vector<1x128xf32> to vector<64x128xf32>
    %86 = arith.addf %83, %85 : vector<64x128xf32>
    %87 = vector.shape_cast %86 : vector<64x128xf32> to vector<8x8x128xf32>
    %c0_74 = arith.constant 0 : index
    %c0_75 = arith.constant 0 : index
    %c0_76 = arith.constant 0 : index
    %88 = vector.load %arg9[%c0_74, %c0_75, %c0_76] : memref<8x8x128xf32, #tpu.memory_space<vmem>>, vector<8x8x128xf32>
    tpu.vector_store %arg9[%c0_74, %c0_75, %c0_76], %87 {strides = array<i32>} : memref<8x8x128xf32, #tpu.memory_space<vmem>>, vector<8x8x128xf32>,
    %c0_77 = arith.constant 0 : index
    %c0_78 = arith.constant 0 : index
    %89 = vector.load %arg10[%c0_77, %c0_78] : memref<8x32xf32, #tpu.memory_space<vmem>>, vector<8x32xf32>
    tpu.vector_store %arg10[%c0_77, %c0_78], %76 {strides = array<i32>} : memref<8x32xf32, #tpu.memory_space<vmem>>, vector<8x32xf32>,
    return
  }
}

</mosaic_0001>

<llo_original>
// kernel: tpu_custom_call.1
$region0: #{tpu_custom_call.1}
  #allocation0 [shape = 'u32[]', space=smem, size = 0x4, offset = 0x4, fixed_abs, tag = 'smem constant byte address 0x4 - core index']
  #allocation1 [shape = 'u32[144,128]{1,0:T(1,128)}', space=vmem, size = 0x12000, scoped, tag = 'internal scratch']
  #allocation2 [shape = 'f32[8,8,32]{2,1,0:T(8,128)}', space=vmem, size = 0x8000, scoped, tag = 'scratch operand']
  %s0 = inlined_call_operand.vmem [shape: f32[64,16], index: 0, kind: input, shape index: {}]
  %s1 = inlined_call_operand.hbm [shape: f32[8,16], index: 1, kind: input, shape index: {}]
  %s2 = inlined_call_operand.hbm [shape: f32[8,32], index: 2, kind: input, shape index: {}]
  %s3 = inlined_call_operand.vmem [shape: f32[32,32], index: 3, kind: input, shape index: {}]
  %s4 = inlined_call_operand.vmem [shape: f32[16,32], index: 4, kind: input, shape index: {}]
  %s5 = inlined_call_operand.vmem [shape: f32[16,32], index: 5, kind: input, shape index: {}]
  %s6 = inlined_call_operand.vmem [shape: f32[1,32], index: 6, kind: input, shape index: {}]
  %s7 = inlined_call_operand.vmem [shape: f32[32,128], index: 7, kind: input, shape index: {}]
  %s8 = inlined_call_operand.vmem [shape: f32[1,128], index: 8, kind: input, shape index: {}]
  %s9 = inlined_call_operand.hbm [shape: f32[8,8,128], index: 9, kind: output, shape index: {0}]
  %s10 = inlined_call_operand.hbm [shape: f32[8,32], index: 10, kind: output, shape index: {1}]
  %11 = xla_tuple %s9, %s10
  %s12 = sld [smem:[#allocation0]]
  $region62: #{tpu_custom_call.1} parent=0
    _
  %s14 = ssub.s32 1, %s12
  %s15 = scalar_select 0, %s14, %s12
  $region1: #{tpu_custom_call.1} parent=0
    #allocation3 [shape = 'u8[4096]{0}', space=vmem, size = 0x1000, scoped, tag = 'input window, operand 1, single buffered']
    #allocation4 [shape = 's32[1]{0}', space=sflag, size = 0x4, scoped, tag = 'scoped memory for tpu_custom_call.1']
    #allocation5 [shape = 's32[1]{0}', space=sflag, size = 0x4, scoped, tag = 'scoped memory for tpu_custom_call.1']
    #allocation6 [shape = 'u8[4096]{0}', space=vmem, size = 0x1000, scoped, tag = 'input window, operand 2, single buffered']
    #allocation7 [shape = 's32[1]{0}', space=sflag, size = 0x4, scoped, tag = 'scoped memory for tpu_custom_call.1']
    #allocation8 [shape = 'u8[32768]{0}', space=vmem, size = 0x8000, scoped, tag = 'output window, operand 0, single buffered']
    #allocation9 [shape = 'u8[4096]{0}', space=vmem, size = 0x1000, scoped, tag = 'output window, operand 1, single buffered']
    #allocation10 [shape = 's32[1]{0}', space=sflag, size = 0x4, scoped, tag = 'scoped memory for tpu_custom_call.1']
    %16 = vsyncpa [#allocation4], 0
    %17 = vsyncpa [#allocation7], 0
    %18 = vsyncpa [#allocation5], 0
    %19 = vsyncpa [#allocation10], 0
    // Predicated region
    $region2: #{tpu_custom_call.1} parent=1 // pred_check
      _
    $region3: #{tpu_custom_call.1} parent=1 // pred_check_branch
      %21 = sbr.rel (0) target = $region5
    $region4: #{tpu_custom_call.1} parent=1 // pred_region
      _
    $region5: #{tpu_custom_call.1} parent=1 // pred_fallthru
      _
    // Predicated region
    $region6: #{tpu_custom_call.1} parent=1 // pred_check
      _
    $region7: #{tpu_custom_call.1} parent=1 // pred_check_branch
      %23 = sbr.rel (0) target = $region9
    $region8: #{tpu_custom_call.1} parent=1 // pred_region
      %s25 = ssub.s32 128, 128
      %26 = vsyncadd [#allocation4], %s25
      %s28 = sshll.u32 [#allocation3], 4
      %s29 = int_to_ptr.vmem [resolvable:$true] %s28
      %31 = dma.hbm_to_vmem [thread:$0]  %s1, 128, %s29, [#allocation4]
    $region9: #{tpu_custom_call.1} parent=1 // pred_fallthru
      _
    // Predicated region
    $region10: #{tpu_custom_call.1} parent=1 // pred_check
      _
    $region11: #{tpu_custom_call.1} parent=1 // pred_check_branch
      %33 = sbr.rel (0) target = $region13
    $region12: #{tpu_custom_call.1} parent=1 // pred_region
      %s35 = ssub.s32 128, 128
      %36 = vsyncadd [#allocation7], %s35
      %s38 = sshll.u32 [#allocation6], 4
      %s39 = int_to_ptr.vmem [resolvable:$true] %s38
      %41 = dma.hbm_to_vmem [thread:$0]  %s2, 128, %s39, [#allocation7]
    $region13: #{tpu_custom_call.1} parent=1 // pred_fallthru
      _
    // Predicated region
    $region14: #{tpu_custom_call.1} parent=1 // pred_check
      _
    $region15: #{tpu_custom_call.1} parent=1 // pred_check_branch
      %43 = sbr.rel (0) target = $region17
    $region16: #{tpu_custom_call.1} parent=1 // pred_region
      _
    $region17: #{tpu_custom_call.1} parent=1 // pred_fallthru
      _
    // Predicated region
    $region18: #{tpu_custom_call.1} parent=1 // pred_check
      _
    $region19: #{tpu_custom_call.1} parent=1 // pred_check_branch
      %45 = sbr.rel (0) target = $region21
    $region20: #{tpu_custom_call.1} parent=1 // pred_region
      _
    $region21: #{tpu_custom_call.1} parent=1 // pred_fallthru
      _
    // Predicated region
    $region22: #{tpu_custom_call.1} parent=1 // pred_check
      _
    $region23: #{tpu_custom_call.1} parent=1 // pred_check_branch
      %47 = sbr.rel (0) target = $region25
    $region24: #{tpu_custom_call.1} parent=1 // pred_region
      _
    $region25: #{tpu_custom_call.1} parent=1 // pred_fallthru
      _
    // Predicated region
    $region26: #{tpu_custom_call.1} parent=1 // pred_check
      _
    $region27: #{tpu_custom_call.1} parent=1 // pred_check_branch
      %49 = sbr.rel (0) target = $region29
    $region28: #{tpu_custom_call.1} parent=1 // pred_region
      _
    $region29: #{tpu_custom_call.1} parent=1 // pred_fallthru
      _
    // Predicated region
    $region30: #{tpu_custom_call.1} parent=1 // pred_check
      _
    $region31: #{tpu_custom_call.1} parent=1 // pred_check_branch
      %51 = sbr.rel (0) target = $region33
    $region32: #{tpu_custom_call.1} parent=1 // pred_region
      _
    $region33: #{tpu_custom_call.1} parent=1 // pred_fallthru
      _
    // Predicated region
    $region34: #{tpu_custom_call.1} parent=1 // pred_check
      _
    $region35: #{tpu_custom_call.1} parent=1 // pred_check_branch
      %53 = sbr.rel (0) target = $region37
    $region36: #{tpu_custom_call.1} parent=1 // pred_region
      _
    $region37: #{tpu_custom_call.1} parent=1 // pred_fallthru
      _
    // Predicated region
    $region38: #{tpu_custom_call.1} parent=1 // pred_check
      _
    $region39: #{tpu_custom_call.1} parent=1 // pred_check_branch
      %55 = sbr.rel (0) target = $region41
    $region40: #{tpu_custom_call.1} parent=1 // pred_region
      %56 = dma.done [#allocation4], 128
    $region41: #{tpu_custom_call.1} parent=1 // pred_fallthru
      _
    // Predicated region
    $region42: #{tpu_custom_call.1} parent=1 // pred_check
      _
    $region43: #{tpu_custom_call.1} parent=1 // pred_check_branch
      %58 = sbr.rel (0) target = $region45
    $region44: #{tpu_custom_call.1} parent=1 // pred_region
      %59 = dma.done [#allocation7], 128
    $region45: #{tpu_custom_call.1} parent=1 // pred_fallthru
      _
    %v60 = vld [vmem:[#allocation3] sm:$0xff]
    %v61 = vld [vmem:[%s5] sm:$0xff]
    %v62 = vld [vmem:[%s5 + $0x8] sm:$0xff]
    %v63 = vld [vmem:[%s6] sm:$0x1]
    %v65 = vlaneseq
    %v66 = vshrl.u32 %v65, 7
    %v67 = vsub.s32 0, %v66
    %v68 = vrot.slane %v63, %v67
    %vm70 = vcmask 130048
    %v72 = vsel %vm70, %v60, 0
    %74 = vmatprep.subr.mxu0 0.0
    %75 = vmatpush1.msra.mxu0 %v61
    %76 = vmatprep.subr.mxu0 0.0
    %77 = vmatpush1.msra.mxu0 %v62
    %78 = vmatprep.subr.mxu0 0.0
    %79 = vmatpush1.msra.mxu0 0.0
    %80 = vmatprep.subr.mxu0 0.0
    %81 = vmatpush1.msra.mxu0 0.0
    %82 = vmatprep.subr.mxu0 0.0
    %83 = vmatpush1.msra.mxu0 0.0
    %84 = vmatprep.subr.mxu0 0.0
    %85 = vmatpush1.msra.mxu0 0.0
    %86 = vmatprep.subr.mxu0 0.0
    %87 = vmatpush1.msra.mxu0 0.0
    %88 = vmatprep.subr.mxu0 0.0
    %89 = vmatpush1.msra.mxu0 0.0
    %90 = vmatprep.subr.mxu0 0.0
    %91 = vmatpush1.msra.mxu0 0.0
    %92 = vmatprep.subr.mxu0 0.0
    %93 = vmatpush1.msra.mxu0 0.0
    %94 = vmatprep.subr.mxu0 0.0
    %95 = vmatpush1.msra.mxu0 0.0
    %96 = vmatprep.subr.mxu0 0.0
    %97 = vmatpush1.msra.mxu0 0.0
    %98 = vmatprep.subr.mxu0 0.0
    %99 = vmatpush1.msra.mxu0 0.0
    %100 = vmatprep.subr.mxu0 0.0
    %101 = vmatpush1.msra.mxu0 0.0
    %102 = vmatprep.subr.mxu0 0.0
    %103 = vmatpush1.msra.mxu0 0.0
    %104 = vmatprep.subr.mxu0 0.0
    %105 = vmatpush1.msra.mxu0 0.0
    %106 = vmatprep.subr.mxu0 0.0
    %107 = vmatpush1.msra.mxu0 0.0
    %108 = vmatprep.subr.mxu0 0.0
    %109 = vmatpush1.msra.mxu0 0.0
    %110 = vmatprep.subr.mxu0 0.0
    %111 = vmatpush1.msra.mxu0 0.0
    %112 = vmatprep.subr.mxu0 0.0
    %113 = vmatpush1.msra.mxu0 0.0
    %114 = vmatprep.subr.mxu0 0.0
    %115 = vmatpush1.msra.mxu0 0.0
    %116 = vmatprep.subr.mxu0 0.0
    %117 = vmatpush1.msra.mxu0 0.0
    %118 = vmatprep.subr.mxu0 0.0
    %119 = vmatpush1.msra.mxu0 0.0
    %120 = vmatprep.subr.mxu0 0.0
    %121 = vmatpush1.msra.mxu0 0.0
    %122 = vmatprep.subr.mxu0 0.0
    %123 = vmatpush1.msra.mxu0 0.0
    %124 = vmatprep.subr.mxu0 0.0
    %125 = vmatpush1.msra.mxu0 0.0
    %126 = vmatprep.subr.mxu0 0.0
    %127 = vmatpush1.msra.mxu0 0.0
    %128 = vmatprep.subr.mxu0 0.0
    %129 = vmatpush1.msra.mxu0 0.0
    %130 = vmatprep.subr.mxu0 0.0
    %131 = vmatpush1.msra.mxu0 0.0
    %132 = vmatprep.subr.mxu0 0.0
    %133 = vmatpush1.msra.mxu0 0.0
    %134 = vmatprep.subr.mxu0 0.0
    %135 = vmatpush1.msra.mxu0 0.0
    %136 = vmatprep.subr.mxu0 0.0
    %137 = vmatpush1.msra.mxu0 0.0
    %138 = vmatprep.mubr.f32.mxu0 0.0
    %139 = vmatmul.mubr.f32.gmra.mrb[0].mxu0 %v72
    %v140 = vpop.f32.mrb[0].mxu0
    %v141 = vadd.f32 %v68, %v140
    %v142 = vpop.f32.mrb[0].mxu0
    %143 = vdwg.mxu0
    %v144 = vld [vmem:[%s0] sm:$0xff]
    %v145 = vld [vmem:[%s0 + $0x8] sm:$0xff]
    %v146 = vld [vmem:[%s0 + $0x10] sm:$0xff]
    %v147 = vld [vmem:[%s0 + $0x18] sm:$0xff]
    %v148 = vld [vmem:[%s0 + $0x20] sm:$0xff]
    %v149 = vld [vmem:[%s0 + $0x28] sm:$0xff]
    %v150 = vld [vmem:[%s0 + $0x30] sm:$0xff]
    %v151 = vld [vmem:[%s0 + $0x38] sm:$0xff]
    %v152 = vld [vmem:[%s4] sm:$0xff]
    %v153 = vld [vmem:[%s4 + $0x8] sm:$0xff]
    %v155 = vsel %vm70, %v144, 0
    %v158 = vsel %vm70, %v145, 0
    %v161 = vsel %vm70, %v146, 0
    %v164 = vsel %vm70, %v147, 0
    %v167 = vsel %vm70, %v148, 0
    %v170 = vsel %vm70, %v149, 0
    %v173 = vsel %vm70, %v150, 0
    %v176 = vsel %vm70, %v151, 0
    %178 = vmatprep.subr.mxu0 0.0
    %179 = vmatpush1.msra.mxu0 %v152
    %180 = vmatprep.subr.mxu0 0.0
    %181 = vmatpush1.msra.mxu0 %v153
    %182 = vmatprep.subr.mxu0 0.0
    %183 = vmatpush1.msra.mxu0 0.0
    %184 = vmatprep.subr.mxu0 0.0
    %185 = vmatpush1.msra.mxu0 0.0
    %186 = vmatprep.subr.mxu0 0.0
    %187 = vmatpush1.msra.mxu0 0.0
    %188 = vmatprep.subr.mxu0 0.0
    %189 = vmatpush1.msra.mxu0 0.0
    %190 = vmatprep.subr.mxu0 0.0
    %191 = vmatpush1.msra.mxu0 0.0
    %192 = vmatprep.subr.mxu0 0.0
    %193 = vmatpush1.msra.mxu0 0.0
    %194 = vmatprep.subr.mxu0 0.0
    %195 = vmatpush1.msra.mxu0 0.0
    %196 = vmatprep.subr.mxu0 0.0
    %197 = vmatpush1.msra.mxu0 0.0
    %198 = vmatprep.subr.mxu0 0.0
    %199 = vmatpush1.msra.mxu0 0.0
    %200 = vmatprep.subr.mxu0 0.0
    %201 = vmatpush1.msra.mxu0 0.0
    %202 = vmatprep.subr.mxu0 0.0
    %203 = vmatpush1.msra.mxu0 0.0
    %204 = vmatprep.subr.mxu0 0.0
    %205 = vmatpush1.msra.mxu0 0.0
    %206 = vmatprep.subr.mxu0 0.0
    %207 = vmatpush1.msra.mxu0 0.0
    %208 = vmatprep.subr.mxu0 0.0
    %209 = vmatpush1.msra.mxu0 0.0
    %210 = vmatprep.subr.mxu0 0.0
    %211 = vmatpush1.msra.mxu0 0.0
    %212 = vmatprep.subr.mxu0 0.0
    %213 = vmatpush1.msra.mxu0 0.0
    %214 = vmatprep.subr.mxu0 0.0
    %215 = vmatpush1.msra.mxu0 0.0
    %216 = vmatprep.subr.mxu0 0.0
    %217 = vmatpush1.msra.mxu0 0.0
    %218 = vmatprep.subr.mxu0 0.0
    %219 = vmatpush1.msra.mxu0 0.0
    %220 = vmatprep.subr.mxu0 0.0
    %221 = vmatpush1.msra.mxu0 0.0
    %222 = vmatprep.subr.mxu0 0.0
    %223 = vmatpush1.msra.mxu0 0.0
    %224 = vmatprep.subr.mxu0 0.0
    %225 = vmatpush1.msra.mxu0 0.0
    %226 = vmatprep.subr.mxu0 0.0
    %227 = vmatpush1.msra.mxu0 0.0
    %228 = vmatprep.subr.mxu0 0.0
    %229 = vmatpush1.msra.mxu0 0.0
    %230 = vmatprep.subr.mxu0 0.0
    %231 = vmatpush1.msra.mxu0 0.0
    %232 = vmatprep.subr.mxu0 0.0
    %233 = vmatpush1.msra.mxu0 0.0
    %234 = vmatprep.subr.mxu0 0.0
    %235 = vmatpush1.msra.mxu0 0.0
    %236 = vmatprep.subr.mxu0 0.0
    %237 = vmatpush1.msra.mxu0 0.0
    %238 = vmatprep.subr.mxu0 0.0
    %239 = vmatpush1.msra.mxu0 0.0
    %240 = vmatprep.subr.mxu0 0.0
    %241 = vmatpush1.msra.mxu0 0.0
    %242 = vmatprep.mubr.f32.mxu0 0.0
    %243 = vmatmul.mubr.f32.gmra.mrb[0].mxu0 %v155
    %v244 = vpop.f32.mrb[0].mxu0
    %v245 = vadd.f32 0.0, %v244
    %v246 = vpop.f32.mrb[0].mxu0
    %247 = vmatprep.mubr.f32.mxu0 0.0
    %248 = vmatmul.mubr.f32.gmra.mrb[0].mxu0 %v158
    %v249 = vpop.f32.mrb[0].mxu0
    %v250 = vadd.f32 0.0, %v249
    %v251 = vpop.f32.mrb[0].mxu0
    %252 = vmatprep.mubr.f32.mxu0 0.0
    %253 = vmatmul.mubr.f32.gmra.mrb[0].mxu0 %v161
    %v254 = vpop.f32.mrb[0].mxu0
    %v255 = vadd.f32 0.0, %v254
    %v256 = vpop.f32.mrb[0].mxu0
    %257 = vmatprep.mubr.f32.mxu0 0.0
    %258 = vmatmul.mubr.f32.gmra.mrb[0].mxu0 %v164
    %v259 = vpop.f32.mrb[0].mxu0
    %v260 = vadd.f32 0.0, %v259
    %v261 = vpop.f32.mrb[0].mxu0
    %262 = vmatprep.mubr.f32.mxu0 0.0
    %263 = vmatmul.mubr.f32.gmra.mrb[0].mxu0 %v167
    %v264 = vpop.f32.mrb[0].mxu0
    %v265 = vadd.f32 0.0, %v264
    %v266 = vpop.f32.mrb[0].mxu0
    %267 = vmatprep.mubr.f32.mxu0 0.0
    %268 = vmatmul.mubr.f32.gmra.mrb[0].mxu0 %v170
    %v269 = vpop.f32.mrb[0].mxu0
    %v270 = vadd.f32 0.0, %v269
    %v271 = vpop.f32.mrb[0].mxu0
    %272 = vmatprep.mubr.f32.mxu0 0.0
    %273 = vmatmul.mubr.f32.gmra.mrb[0].mxu0 %v173
    %v274 = vpop.f32.mrb[0].mxu0
    %v275 = vadd.f32 0.0, %v274
    %v276 = vpop.f32.mrb[0].mxu0
    %277 = vmatprep.mubr.f32.mxu0 0.0
    %278 = vmatmul.mubr.f32.gmra.mrb[0].mxu0 %v176
    %v279 = vpop.f32.mrb[0].mxu0
    %v280 = vadd.f32 0.0, %v279
    %v281 = vpop.f32.mrb[0].mxu0
    %282 = vdwg.mxu0
    %v283 = vadd.f32 %v245, %v141
    %v284 = vadd.f32 %v250, %v141
    %v285 = vadd.f32 %v255, %v141
    %v286 = vadd.f32 %v260, %v141
    %v287 = vadd.f32 %v265, %v141
    %v288 = vadd.f32 %v270, %v141
    %v289 = vadd.f32 %v275, %v141
    %v290 = vadd.f32 %v280, %v141
    %vm291 = vcmask 261120
    %292 = vst.msk [vmem:[#allocation2] sm:$0xff] %vm291, %v283
    %293 = vst.msk [vmem:[#allocation2 + $0x8] sm:$0xff] %vm291, %v284
    %294 = vst.msk [vmem:[#allocation2 + $0x10] sm:$0xff] %vm291, %v285
    %295 = vst.msk [vmem:[#allocation2 + $0x18] sm:$0xff] %vm291, %v286
    %296 = vst.msk [vmem:[#allocation2 + $0x20] sm:$0xff] %vm291, %v287
    %297 = vst.msk [vmem:[#allocation2 + $0x28] sm:$0xff] %vm291, %v288
    %298 = vst.msk [vmem:[#allocation2 + $0x30] sm:$0xff] %vm291, %v289
    %299 = vst.msk [vmem:[#allocation2 + $0x38] sm:$0xff] %vm291, %v290
    %v300 = vld [vmem:[%s3] sm:$0xff]
    %v301 = vld [vmem:[%s3 + $0x8] sm:$0xff]
    %v302 = vld [vmem:[%s3 + $0x10] sm:$0xff]
    %v303 = vld [vmem:[%s3 + $0x18] sm:$0xff]
    %v304 = vld [vmem:[#allocation6] sm:$0xff]
    %v305 = vld [vmem:[#allocation2] sm:$0xff]
    %v307 = vsel %vm291, %v304, 0
    %309 = vmatprep.subr.mxu0 0.0
    %310 = vmatpush1.msra.mxu0 %v300
    %311 = vmatprep.subr.mxu0 0.0
    %312 = vmatpush1.msra.mxu0 %v301
    %313 = vmatprep.subr.mxu0 0.0
    %314 = vmatpush1.msra.mxu0 %v302
    %315 = vmatprep.subr.mxu0 0.0
    %316 = vmatpush1.msra.mxu0 %v303
    %317 = vmatprep.subr.mxu0 0.0
    %318 = vmatpush1.msra.mxu0 0.0
    %319 = vmatprep.subr.mxu0 0.0
    %320 = vmatpush1.msra.mxu0 0.0
    %321 = vmatprep.subr.mxu0 0.0
    %322 = vmatpush1.msra.mxu0 0.0
    %323 = vmatprep.subr.mxu0 0.0
    %324 = vmatpush1.msra.mxu0 0.0
    %325 = vmatprep.subr.mxu0 0.0
    %326 = vmatpush1.msra.mxu0 0.0
    %327 = vmatprep.subr.mxu0 0.0
    %328 = vmatpush1.msra.mxu0 0.0
    %329 = vmatprep.subr.mxu0 0.0
    %330 = vmatpush1.msra.mxu0 0.0
    %331 = vmatprep.subr.mxu0 0.0
    %332 = vmatpush1.msra.mxu0 0.0
    %333 = vmatprep.subr.mxu0 0.0
    %334 = vmatpush1.msra.mxu0 0.0
    %335 = vmatprep.subr.mxu0 0.0
    %336 = vmatpush1.msra.mxu0 0.0
    %337 = vmatprep.subr.mxu0 0.0
    %338 = vmatpush1.msra.mxu0 0.0
    %339 = vmatprep.subr.mxu0 0.0
    %340 = vmatpush1.msra.mxu0 0.0
    %341 = vmatprep.subr.mxu0 0.0
    %342 = vmatpush1.msra.mxu0 0.0
    %343 = vmatprep.subr.mxu0 0.0
    %344 = vmatpush1.msra.mxu0 0.0
    %345 = vmatprep.subr.mxu0 0.0
    %346 = vmatpush1.msra.mxu0 0.0
    %347 = vmatprep.subr.mxu0 0.0
    %348 = vmatpush1.msra.mxu0 0.0
    %349 = vmatprep.subr.mxu0 0.0
    %350 = vmatpush1.msra.mxu0 0.0
    %351 = vmatprep.subr.mxu0 0.0
    %352 = vmatpush1.msra.mxu0 0.0
    %353 = vmatprep.subr.mxu0 0.0
    %354 = vmatpush1.msra.mxu0 0.0
    %355 = vmatprep.subr.mxu0 0.0
    %356 = vmatpush1.msra.mxu0 0.0
    %357 = vmatprep.subr.mxu0 0.0
    %358 = vmatpush1.msra.mxu0 0.0
    %359 = vmatprep.subr.mxu0 0.0
    %360 = vmatpush1.msra.mxu0 0.0
    %361 = vmatprep.subr.mxu0 0.0
    %362 = vmatpush1.msra.mxu0 0.0
    %363 = vmatprep.subr.mxu0 0.0
    %364 = vmatpush1.msra.mxu0 0.0
    %365 = vmatprep.subr.mxu0 0.0
    %366 = vmatpush1.msra.mxu0 0.0
    %367 = vmatprep.subr.mxu0 0.0
    %368 = vmatpush1.msra.mxu0 0.0
    %369 = vmatprep.subr.mxu0 0.0
    %370 = vmatpush1.msra.mxu0 0.0
    %371 = vmatprep.subr.mxu0 0.0
    %372 = vmatpush1.msra.mxu0 0.0
    %373 = vmatprep.mubr.f32.mxu0 0.0
    %374 = vmatmul.mubr.f32.gmra.mrb[0].mxu0 %v307
    %v375 = vpop.f32.mrb[0].mxu0
    %v376 = vadd.f32 %v305, %v375
    %v377 = vpop.f32.mrb[0].mxu0
    %378 = vdwg.mxu0
    %v379 = vtanh.pop %v376
    %380 = vst.msk [vmem:[#allocation2] sm:$0xff] %vm291, %v379
    %s381 = scalar_lea.vmem [#allocation2], 8
    %v382 = vld [vmem:[%s381] sm:$0xff]
    %v384 = vsel %vm291, %v379, 0
    %386 = vmatprep.subr.mxu0 0.0
    %387 = vmatpush1.msra.mxu0 %v300
    %388 = vmatprep.subr.mxu0 0.0
    %389 = vmatpush1.msra.mxu0 %v301
    %390 = vmatprep.subr.mxu0 0.0
    %391 = vmatpush1.msra.mxu0 %v302
    %392 = vmatprep.subr.mxu0 0.0
    %393 = vmatpush1.msra.mxu0 %v303
    %394 = vmatprep.subr.mxu0 0.0
    %395 = vmatpush1.msra.mxu0 0.0
    %396 = vmatprep.subr.mxu0 0.0
    %397 = vmatpush1.msra.mxu0 0.0
    %398 = vmatprep.subr.mxu0 0.0
    %399 = vmatpush1.msra.mxu0 0.0
    %400 = vmatprep.subr.mxu0 0.0
    %401 = vmatpush1.msra.mxu0 0.0
    %402 = vmatprep.subr.mxu0 0.0
    %403 = vmatpush1.msra.mxu0 0.0
    %404 = vmatprep.subr.mxu0 0.0
    %405 = vmatpush1.msra.mxu0 0.0
    %406 = vmatprep.subr.mxu0 0.0
    %407 = vmatpush1.msra.mxu0 0.0
    %408 = vmatprep.subr.mxu0 0.0
    %409 = vmatpush1.msra.mxu0 0.0
    %410 = vmatprep.subr.mxu0 0.0
    %411 = vmatpush1.msra.mxu0 0.0
    %412 = vmatprep.subr.mxu0 0.0
    %413 = vmatpush1.msra.mxu0 0.0
    %414 = vmatprep.subr.mxu0 0.0
    %415 = vmatpush1.msra.mxu0 0.0
    %416 = vmatprep.subr.mxu0 0.0
    %417 = vmatpush1.msra.mxu0 0.0
    %418 = vmatprep.subr.mxu0 0.0
    %419 = vmatpush1.msra.mxu0 0.0
    %420 = vmatprep.subr.mxu0 0.0
    %421 = vmatpush1.msra.mxu0 0.0
    %422 = vmatprep.subr.mxu0 0.0
    %423 = vmatpush1.msra.mxu0 0.0
    %424 = vmatprep.subr.mxu0 0.0
    %425 = vmatpush1.msra.mxu0 0.0
    %426 = vmatprep.subr.mxu0 0.0
    %427 = vmatpush1.msra.mxu0 0.0
    %428 = vmatprep.subr.mxu0 0.0
    %429 = vmatpush1.msra.mxu0 0.0
    %430 = vmatprep.subr.mxu0 0.0
    %431 = vmatpush1.msra.mxu0 0.0
    %432 = vmatprep.subr.mxu0 0.0
    %433 = vmatpush1.msra.mxu0 0.0
    %434 = vmatprep.subr.mxu0 0.0
    %435 = vmatpush1.msra.mxu0 0.0
    %436 = vmatprep.subr.mxu0 0.0
    %437 = vmatpush1.msra.mxu0 0.0
    %438 = vmatprep.subr.mxu0 0.0
    %439 = vmatpush1.msra.mxu0 0.0
    %440 = vmatprep.subr.mxu0 0.0
    %441 = vmatpush1.msra.mxu0 0.0
    %442 = vmatprep.subr.mxu0 0.0
    %443 = vmatpush1.msra.mxu0 0.0
    %444 = vmatprep.subr.mxu0 0.0
    %445 = vmatpush1.msra.mxu0 0.0
    %446 = vmatprep.subr.mxu0 0.0
    %447 = vmatpush1.msra.mxu0 0.0
    %448 = vmatprep.subr.mxu0 0.0
    %449 = vmatpush1.msra.mxu0 0.0
    %450 = vmatprep.mubr.f32.mxu0 0.0
    %451 = vmatmul.mubr.f32.gmra.mrb[0].mxu0 %v384
    %v452 = vpop.f32.mrb[0].mxu0
    %v453 = vadd.f32 %v382, %v452
    %v454 = vpop.f32.mrb[0].mxu0
    %455 = vdwg.mxu0
    %v456 = vtanh.pop %v453
    %457 = vst.msk [vmem:[%s381] sm:$0xff] %vm291, %v456
    %s458 = scalar_lea.vmem [#allocation2], 16
    %v459 = vld [vmem:[%s458] sm:$0xff]
    %v461 = vsel %vm291, %v456, 0
    %463 = vmatprep.subr.mxu0 0.0
    %464 = vmatpush1.msra.mxu0 %v300
    %465 = vmatprep.subr.mxu0 0.0
    %466 = vmatpush1.msra.mxu0 %v301
    %467 = vmatprep.subr.mxu0 0.0
    %468 = vmatpush1.msra.mxu0 %v302
    %469 = vmatprep.subr.mxu0 0.0
    %470 = vmatpush1.msra.mxu0 %v303
    %471 = vmatprep.subr.mxu0 0.0
    %472 = vmatpush1.msra.mxu0 0.0
    %473 = vmatprep.subr.mxu0 0.0
    %474 = vmatpush1.msra.mxu0 0.0
    %475 = vmatprep.subr.mxu0 0.0
    %476 = vmatpush1.msra.mxu0 0.0
    %477 = vmatprep.subr.mxu0 0.0
    %478 = vmatpush1.msra.mxu0 0.0
    %479 = vmatprep.subr.mxu0 0.0
    %480 = vmatpush1.msra.mxu0 0.0
    %481 = vmatprep.subr.mxu0 0.0
    %482 = vmatpush1.msra.mxu0 0.0
    %483 = vmatprep.subr.mxu0 0.0
    %484 = vmatpush1.msra.mxu0 0.0
    %485 = vmatprep.subr.mxu0 0.0
    %486 = vmatpush1.msra.mxu0 0.0
    %487 = vmatprep.subr.mxu0 0.0
    %488 = vmatpush1.msra.mxu0 0.0
    %489 = vmatprep.subr.mxu0 0.0
    %490 = vmatpush1.msra.mxu0 0.0
    %491 = vmatprep.subr.mxu0 0.0
    %492 = vmatpush1.msra.mxu0 0.0
    %493 = vmatprep.subr.mxu0 0.0
    %494 = vmatpush1.msra.mxu0 0.0
    %495 = vmatprep.subr.mxu0 0.0
    %496 = vmatpush1.msra.mxu0 0.0
    %497 = vmatprep.subr.mxu0 0.0
    %498 = vmatpush1.msra.mxu0 0.0
    %499 = vmatprep.subr.mxu0 0.0
    %500 = vmatpush1.msra.mxu0 0.0
    %501 = vmatprep.subr.mxu0 0.0
    %502 = vmatpush1.msra.mxu0 0.0
    %503 = vmatprep.subr.mxu0 0.0
    %504 = vmatpush1.msra.mxu0 0.0
    %505 = vmatprep.subr.mxu0 0.0
    %506 = vmatpush1.msra.mxu0 0.0
    %507 = vmatprep.subr.mxu0 0.0
    %508 = vmatpush1.msra.mxu0 0.0
    %509 = vmatprep.subr.mxu0 0.0
    %510 = vmatpush1.msra.mxu0 0.0
    %511 = vmatprep.subr.mxu0 0.0
    %512 = vmatpush1.msra.mxu0 0.0
    %513 = vmatprep.subr.mxu0 0.0
    %514 = vmatpush1.msra.mxu0 0.0
    %515 = vmatprep.subr.mxu0 0.0
    %516 = vmatpush1.msra.mxu0 0.0
    %517 = vmatprep.subr.mxu0 0.0
    %518 = vmatpush1.msra.mxu0 0.0
    %519 = vmatprep.subr.mxu0 0.0
    %520 = vmatpush1.msra.mxu0 0.0
    %521 = vmatprep.subr.mxu0 0.0
    %522 = vmatpush1.msra.mxu0 0.0
    %523 = vmatprep.subr.mxu0 0.0
    %524 = vmatpush1.msra.mxu0 0.0
    %525 = vmatprep.subr.mxu0 0.0
    %526 = vmatpush1.msra.mxu0 0.0
    %527 = vmatprep.mubr.f32.mxu0 0.0
    %528 = vmatmul.mubr.f32.gmra.mrb[0].mxu0 %v461
    %v529 = vpop.f32.mrb[0].mxu0
    %v530 = vadd.f32 %v459, %v529
    %v531 = vpop.f32.mrb[0].mxu0
    %532 = vdwg.mxu0
    %v533 = vtanh.pop %v530
    %534 = vst.msk [vmem:[%s458] sm:$0xff] %vm291, %v533
    %s535 = scalar_lea.vmem [#allocation2], 24
    %v536 = vld [vmem:[%s535] sm:$0xff]
    %v538 = vsel %vm291, %v533, 0
    %540 = vmatprep.subr.mxu0 0.0
    %541 = vmatpush1.msra.mxu0 %v300
    %542 = vmatprep.subr.mxu0 0.0
    %543 = vmatpush1.msra.mxu0 %v301
    %544 = vmatprep.subr.mxu0 0.0
    %545 = vmatpush1.msra.mxu0 %v302
    %546 = vmatprep.subr.mxu0 0.0
    %547 = vmatpush1.msra.mxu0 %v303
    %548 = vmatprep.subr.mxu0 0.0
    %549 = vmatpush1.msra.mxu0 0.0
    %550 = vmatprep.subr.mxu0 0.0
    %551 = vmatpush1.msra.mxu0 0.0
    %552 = vmatprep.subr.mxu0 0.0
    %553 = vmatpush1.msra.mxu0 0.0
    %554 = vmatprep.subr.mxu0 0.0
    %555 = vmatpush1.msra.mxu0 0.0
    %556 = vmatprep.subr.mxu0 0.0
    %557 = vmatpush1.msra.mxu0 0.0
    %558 = vmatprep.subr.mxu0 0.0
    %559 = vmatpush1.msra.mxu0 0.0
    %560 = vmatprep.subr.mxu0 0.0
    %561 = vmatpush1.msra.mxu0 0.0
    %562 = vmatprep.subr.mxu0 0.0
    %563 = vmatpush1.msra.mxu0 0.0
    %564 = vmatprep.subr.mxu0 0.0
    %565 = vmatpush1.msra.mxu0 0.0
    %566 = vmatprep.subr.mxu0 0.0
    %567 = vmatpush1.msra.mxu0 0.0
    %568 = vmatprep.subr.mxu0 0.0
    %569 = vmatpush1.msra.mxu0 0.0
    %570 = vmatprep.subr.mxu0 0.0
    %571 = vmatpush1.msra.mxu0 0.0
    %572 = vmatprep.subr.mxu0 0.0
    %573 = vmatpush1.msra.mxu0 0.0
    %574 = vmatprep.subr.mxu0 0.0
    %575 = vmatpush1.msra.mxu0 0.0
    %576 = vmatprep.subr.mxu0 0.0
    %577 = vmatpush1.msra.mxu0 0.0
    %578 = vmatprep.subr.mxu0 0.0
    %579 = vmatpush1.msra.mxu0 0.0
    %580 = vmatprep.subr.mxu0 0.0
    %581 = vmatpush1.msra.mxu0 0.0
    %582 = vmatprep.subr.mxu0 0.0
    %583 = vmatpush1.msra.mxu0 0.0
    %584 = vmatprep.subr.mxu0 0.0
    %585 = vmatpush1.msra.mxu0 0.0
    %586 = vmatprep.subr.mxu0 0.0
    %587 = vmatpush1.msra.mxu0 0.0
    %588 = vmatprep.subr.mxu0 0.0
    %589 = vmatpush1.msra.mxu0 0.0
    %590 = vmatprep.subr.mxu0 0.0
    %591 = vmatpush1.msra.mxu0 0.0
    %592 = vmatprep.subr.mxu0 0.0
    %593 = vmatpush1.msra.mxu0 0.0
    %594 = vmatprep.subr.mxu0 0.0
    %595 = vmatpush1.msra.mxu0 0.0
    %596 = vmatprep.subr.mxu0 0.0
    %597 = vmatpush1.msra.mxu0 0.0
    %598 = vmatprep.subr.mxu0 0.0
    %599 = vmatpush1.msra.mxu0 0.0
    %600 = vmatprep.subr.mxu0 0.0
    %601 = vmatpush1.msra.mxu0 0.0
    %602 = vmatprep.subr.mxu0 0.0
    %603 = vmatpush1.msra.mxu0 0.0
    %604 = vmatprep.mubr.f32.mxu0 0.0
    %605 = vmatmul.mubr.f32.gmra.mrb[0].mxu0 %v538
    %v606 = vpop.f32.mrb[0].mxu0
    %v607 = vadd.f32 %v536, %v606
    %v608 = vpop.f32.mrb[0].mxu0
    %609 = vdwg.mxu0
    %v610 = vtanh.pop %v607
    %611 = vst.msk [vmem:[%s535] sm:$0xff] %vm291, %v610
    %s612 = scalar_lea.vmem [#allocation2], 32
    %v613 = vld [vmem:[%s612] sm:$0xff]
    %v615 = vsel %vm291, %v610, 0
    %617 = vmatprep.subr.mxu0 0.0
    %618 = vmatpush1.msra.mxu0 %v300
    %619 = vmatprep.subr.mxu0 0.0
    %620 = vmatpush1.msra.mxu0 %v301
    %621 = vmatprep.subr.mxu0 0.0
    %622 = vmatpush1.msra.mxu0 %v302
    %623 = vmatprep.subr.mxu0 0.0
    %624 = vmatpush1.msra.mxu0 %v303
    %625 = vmatprep.subr.mxu0 0.0
    %626 = vmatpush1.msra.mxu0 0.0
    %627 = vmatprep.subr.mxu0 0.0
    %628 = vmatpush1.msra.mxu0 0.0
    %629 = vmatprep.subr.mxu0 0.0
    %630 = vmatpush1.msra.mxu0 0.0
    %631 = vmatprep.subr.mxu0 0.0
    %632 = vmatpush1.msra.mxu0 0.0
    %633 = vmatprep.subr.mxu0 0.0
    %634 = vmatpush1.msra.mxu0 0.0
    %635 = vmatprep.subr.mxu0 0.0
    %636 = vmatpush1.msra.mxu0 0.0
    %637 = vmatprep.subr.mxu0 0.0
    %638 = vmatpush1.msra.mxu0 0.0
    %639 = vmatprep.subr.mxu0 0.0
    %640 = vmatpush1.msra.mxu0 0.0
    %641 = vmatprep.subr.mxu0 0.0
    %642 = vmatpush1.msra.mxu0 0.0
    %643 = vmatprep.subr.mxu0 0.0
    %644 = vmatpush1.msra.mxu0 0.0
    %645 = vmatprep.subr.mxu0 0.0
    %646 = vmatpush1.msra.mxu0 0.0
    %647 = vmatprep.subr.mxu0 0.0
    %648 = vmatpush1.msra.mxu0 0.0
    %649 = vmatprep.subr.mxu0 0.0
    %650 = vmatpush1.msra.mxu0 0.0
    %651 = vmatprep.subr.mxu0 0.0
    %652 = vmatpush1.msra.mxu0 0.0
    %653 = vmatprep.subr.mxu0 0.0
    %654 = vmatpush1.msra.mxu0 0.0
    %655 = vmatprep.subr.mxu0 0.0
    %656 = vmatpush1.msra.mxu0 0.0
    %657 = vmatprep.subr.mxu0 0.0
    %658 = vmatpush1.msra.mxu0 0.0
    %659 = vmatprep.subr.mxu0 0.0
    %660 = vmatpush1.msra.mxu0 0.0
    %661 = vmatprep.subr.mxu0 0.0
    %662 = vmatpush1.msra.mxu0 0.0
    %663 = vmatprep.subr.mxu0 0.0
    %664 = vmatpush1.msra.mxu0 0.0
    %665 = vmatprep.subr.mxu0 0.0
    %666 = vmatpush1.msra.mxu0 0.0
    %667 = vmatprep.subr.mxu0 0.0
    %668 = vmatpush1.msra.mxu0 0.0
    %669 = vmatprep.subr.mxu0 0.0
    %670 = vmatpush1.msra.mxu0 0.0
    %671 = vmatprep.subr.mxu0 0.0
    %672 = vmatpush1.msra.mxu0 0.0
    %673 = vmatprep.subr.mxu0 0.0
    %674 = vmatpush1.msra.mxu0 0.0
    %675 = vmatprep.subr.mxu0 0.0
    %676 = vmatpush1.msra.mxu0 0.0
    %677 = vmatprep.subr.mxu0 0.0
    %678 = vmatpush1.msra.mxu0 0.0
    %679 = vmatprep.subr.mxu0 0.0
    %680 = vmatpush1.msra.mxu0 0.0
    %681 = vmatprep.mubr.f32.mxu0 0.0
    %682 = vmatmul.mubr.f32.gmra.mrb[0].mxu0 %v615
    %v683 = vpop.f32.mrb[0].mxu0
    %v684 = vadd.f32 %v613, %v683
    %v685 = vpop.f32.mrb[0].mxu0
    %686 = vdwg.mxu0
    %v687 = vtanh.pop %v684
    %688 = vst.msk [vmem:[%s612] sm:$0xff] %vm291, %v687
    %s689 = scalar_lea.vmem [#allocation2], 40
    %v690 = vld [vmem:[%s689] sm:$0xff]
    %v692 = vsel %vm291, %v687, 0
    %694 = vmatprep.subr.mxu0 0.0
    %695 = vmatpush1.msra.mxu0 %v300
    %696 = vmatprep.subr.mxu0 0.0
    %697 = vmatpush1.msra.mxu0 %v301
    %698 = vmatprep.subr.mxu0 0.0
    %699 = vmatpush1.msra.mxu0 %v302
    %700 = vmatprep.subr.mxu0 0.0
    %701 = vmatpush1.msra.mxu0 %v303
    %702 = vmatprep.subr.mxu0 0.0
    %703 = vmatpush1.msra.mxu0 0.0
    %704 = vmatprep.subr.mxu0 0.0
    %705 = vmatpush1.msra.mxu0 0.0
    %706 = vmatprep.subr.mxu0 0.0
    %707 = vmatpush1.msra.mxu0 0.0
    %708 = vmatprep.subr.mxu0 0.0
    %709 = vmatpush1.msra.mxu0 0.0
    %710 = vmatprep.subr.mxu0 0.0
    %711 = vmatpush1.msra.mxu0 0.0
    %712 = vmatprep.subr.mxu0 0.0
    %713 = vmatpush1.msra.mxu0 0.0
    %714 = vmatprep.subr.mxu0 0.0
    %715 = vmatpush1.msra.mxu0 0.0
    %716 = vmatprep.subr.mxu0 0.0
    %717 = vmatpush1.msra.mxu0 0.0
    %718 = vmatprep.subr.mxu0 0.0
    %719 = vmatpush1.msra.mxu0 0.0
    %720 = vmatprep.subr.mxu0 0.0
    %721 = vmatpush1.msra.mxu0 0.0
    %722 = vmatprep.subr.mxu0 0.0
    %723 = vmatpush1.msra.mxu0 0.0
    %724 = vmatprep.subr.mxu0 0.0
    %725 = vmatpush1.msra.mxu0 0.0
    %726 = vmatprep.subr.mxu0 0.0
    %727 = vmatpush1.msra.mxu0 0.0
    %728 = vmatprep.subr.mxu0 0.0
    %729 = vmatpush1.msra.mxu0 0.0
    %730 = vmatprep.subr.mxu0 0.0
    %731 = vmatpush1.msra.mxu0 0.0
    %732 = vmatprep.subr.mxu0 0.0
    %733 = vmatpush1.msra.mxu0 0.0
    %734 = vmatprep.subr.mxu0 0.0
    %735 = vmatpush1.msra.mxu0 0.0
    %736 = vmatprep.subr.mxu0 0.0
    %737 = vmatpush1.msra.mxu0 0.0
    %738 = vmatprep.subr.mxu0 0.0
    %739 = vmatpush1.msra.mxu0 0.0
    %740 = vmatprep.subr.mxu0 0.0
    %741 = vmatpush1.msra.mxu0 0.0
    %742 = vmatprep.subr.mxu0 0.0
    %743 = vmatpush1.msra.mxu0 0.0
    %744 = vmatprep.subr.mxu0 0.0
    %745 = vmatpush1.msra.mxu0 0.0
    %746 = vmatprep.subr.mxu0 0.0
    %747 = vmatpush1.msra.mxu0 0.0
    %748 = vmatprep.subr.mxu0 0.0
    %749 = vmatpush1.msra.mxu0 0.0
    %750 = vmatprep.subr.mxu0 0.0
    %751 = vmatpush1.msra.mxu0 0.0
    %752 = vmatprep.subr.mxu0 0.0
    %753 = vmatpush1.msra.mxu0 0.0
    %754 = vmatprep.subr.mxu0 0.0
    %755 = vmatpush1.msra.mxu0 0.0
    %756 = vmatprep.subr.mxu0 0.0
    %757 = vmatpush1.msra.mxu0 0.0
    %758 = vmatprep.mubr.f32.mxu0 0.0
    %759 = vmatmul.mubr.f32.gmra.mrb[0].mxu0 %v692
    %v760 = vpop.f32.mrb[0].mxu0
    %v761 = vadd.f32 %v690, %v760
    %v762 = vpop.f32.mrb[0].mxu0
    %763 = vdwg.mxu0
    %v764 = vtanh.pop %v761
    %765 = vst.msk [vmem:[%s689] sm:$0xff] %vm291, %v764
    %s766 = scalar_lea.vmem [#allocation2], 48
    %v767 = vld [vmem:[%s766] sm:$0xff]
    %v769 = vsel %vm291, %v764, 0
    %771 = vmatprep.subr.mxu0 0.0
    %772 = vmatpush1.msra.mxu0 %v300
    %773 = vmatprep.subr.mxu0 0.0
    %774 = vmatpush1.msra.mxu0 %v301
    %775 = vmatprep.subr.mxu0 0.0
    %776 = vmatpush1.msra.mxu0 %v302
    %777 = vmatprep.subr.mxu0 0.0
    %778 = vmatpush1.msra.mxu0 %v303
    %779 = vmatprep.subr.mxu0 0.0
    %780 = vmatpush1.msra.mxu0 0.0
    %781 = vmatprep.subr.mxu0 0.0
    %782 = vmatpush1.msra.mxu0 0.0
    %783 = vmatprep.subr.mxu0 0.0
    %784 = vmatpush1.msra.mxu0 0.0
    %785 = vmatprep.subr.mxu0 0.0
    %786 = vmatpush1.msra.mxu0 0.0
    %787 = vmatprep.subr.mxu0 0.0
    %788 = vmatpush1.msra.mxu0 0.0
    %789 = vmatprep.subr.mxu0 0.0
    %790 = vmatpush1.msra.mxu0 0.0
    %791 = vmatprep.subr.mxu0 0.0
    %792 = vmatpush1.msra.mxu0 0.0
    %793 = vmatprep.subr.mxu0 0.0
    %794 = vmatpush1.msra.mxu0 0.0
    %795 = vmatprep.subr.mxu0 0.0
    %796 = vmatpush1.msra.mxu0 0.0
    %797 = vmatprep.subr.mxu0 0.0
    %798 = vmatpush1.msra.mxu0 0.0
    %799 = vmatprep.subr.mxu0 0.0
    %800 = vmatpush1.msra.mxu0 0.0
    %801 = vmatprep.subr.mxu0 0.0
    %802 = vmatpush1.msra.mxu0 0.0
    %803 = vmatprep.subr.mxu0 0.0
    %804 = vmatpush1.msra.mxu0 0.0
    %805 = vmatprep.subr.mxu0 0.0
    %806 = vmatpush1.msra.mxu0 0.0
    %807 = vmatprep.subr.mxu0 0.0
    %808 = vmatpush1.msra.mxu0 0.0
    %809 = vmatprep.subr.mxu0 0.0
    %810 = vmatpush1.msra.mxu0 0.0
    %811 = vmatprep.subr.mxu0 0.0
    %812 = vmatpush1.msra.mxu0 0.0
    %813 = vmatprep.subr.mxu0 0.0
    %814 = vmatpush1.msra.mxu0 0.0
    %815 = vmatprep.subr.mxu0 0.0
    %816 = vmatpush1.msra.mxu0 0.0
    %817 = vmatprep.subr.mxu0 0.0
    %818 = vmatpush1.msra.mxu0 0.0
    %819 = vmatprep.subr.mxu0 0.0
    %820 = vmatpush1.msra.mxu0 0.0
    %821 = vmatprep.subr.mxu0 0.0
    %822 = vmatpush1.msra.mxu0 0.0
    %823 = vmatprep.subr.mxu0 0.0
    %824 = vmatpush1.msra.mxu0 0.0
    %825 = vmatprep.subr.mxu0 0.0
    %826 = vmatpush1.msra.mxu0 0.0
    %827 = vmatprep.subr.mxu0 0.0
    %828 = vmatpush1.msra.mxu0 0.0
    %829 = vmatprep.subr.mxu0 0.0
    %830 = vmatpush1.msra.mxu0 0.0
    %831 = vmatprep.subr.mxu0 0.0
    %832 = vmatpush1.msra.mxu0 0.0
    %833 = vmatprep.subr.mxu0 0.0
    %834 = vmatpush1.msra.mxu0 0.0
    %835 = vmatprep.mubr.f32.mxu0 0.0
    %836 = vmatmul.mubr.f32.gmra.mrb[0].mxu0 %v769
    %v837 = vpop.f32.mrb[0].mxu0
    %v838 = vadd.f32 %v767, %v837
    %v839 = vpop.f32.mrb[0].mxu0
    %840 = vdwg.mxu0
    %v841 = vtanh.pop %v838
    %842 = vst.msk [vmem:[%s766] sm:$0xff] %vm291, %v841
    %s843 = scalar_lea.vmem [#allocation2], 56
    %v844 = vld [vmem:[%s843] sm:$0xff]
    %v846 = vsel %vm291, %v841, 0
    %848 = vmatprep.subr.mxu0 0.0
    %849 = vmatpush1.msra.mxu0 %v300
    %850 = vmatprep.subr.mxu0 0.0
    %851 = vmatpush1.msra.mxu0 %v301
    %852 = vmatprep.subr.mxu0 0.0
    %853 = vmatpush1.msra.mxu0 %v302
    %854 = vmatprep.subr.mxu0 0.0
    %855 = vmatpush1.msra.mxu0 %v303
    %856 = vmatprep.subr.mxu0 0.0
    %857 = vmatpush1.msra.mxu0 0.0
    %858 = vmatprep.subr.mxu0 0.0
    %859 = vmatpush1.msra.mxu0 0.0
    %860 = vmatprep.subr.mxu0 0.0
    %861 = vmatpush1.msra.mxu0 0.0
    %862 = vmatprep.subr.mxu0 0.0
    %863 = vmatpush1.msra.mxu0 0.0
    %864 = vmatprep.subr.mxu0 0.0
    %865 = vmatpush1.msra.mxu0 0.0
    %866 = vmatprep.subr.mxu0 0.0
    %867 = vmatpush1.msra.mxu0 0.0
    %868 = vmatprep.subr.mxu0 0.0
    %869 = vmatpush1.msra.mxu0 0.0
    %870 = vmatprep.subr.mxu0 0.0
    %871 = vmatpush1.msra.mxu0 0.0
    %872 = vmatprep.subr.mxu0 0.0
    %873 = vmatpush1.msra.mxu0 0.0
    %874 = vmatprep.subr.mxu0 0.0
    %875 = vmatpush1.msra.mxu0 0.0
    %876 = vmatprep.subr.mxu0 0.0
    %877 = vmatpush1.msra.mxu0 0.0
    %878 = vmatprep.subr.mxu0 0.0
    %879 = vmatpush1.msra.mxu0 0.0
    %880 = vmatprep.subr.mxu0 0.0
    %881 = vmatpush1.msra.mxu0 0.0
    %882 = vmatprep.subr.mxu0 0.0
    %883 = vmatpush1.msra.mxu0 0.0
    %884 = vmatprep.subr.mxu0 0.0
    %885 = vmatpush1.msra.mxu0 0.0
    %886 = vmatprep.subr.mxu0 0.0
    %887 = vmatpush1.msra.mxu0 0.0
    %888 = vmatprep.subr.mxu0 0.0
    %889 = vmatpush1.msra.mxu0 0.0
    %890 = vmatprep.subr.mxu0 0.0
    %891 = vmatpush1.msra.mxu0 0.0
    %892 = vmatprep.subr.mxu0 0.0
    %893 = vmatpush1.msra.mxu0 0.0
    %894 = vmatprep.subr.mxu0 0.0
    %895 = vmatpush1.msra.mxu0 0.0
    %896 = vmatprep.subr.mxu0 0.0
    %897 = vmatpush1.msra.mxu0 0.0
    %898 = vmatprep.subr.mxu0 0.0
    %899 = vmatpush1.msra.mxu0 0.0
    %900 = vmatprep.subr.mxu0 0.0
    %901 = vmatpush1.msra.mxu0 0.0
    %902 = vmatprep.subr.mxu0 0.0
    %903 = vmatpush1.msra.mxu0 0.0
    %904 = vmatprep.subr.mxu0 0.0
    %905 = vmatpush1.msra.mxu0 0.0
    %906 = vmatprep.subr.mxu0 0.0
    %907 = vmatpush1.msra.mxu0 0.0
    %908 = vmatprep.subr.mxu0 0.0
    %909 = vmatpush1.msra.mxu0 0.0
    %910 = vmatprep.subr.mxu0 0.0
    %911 = vmatpush1.msra.mxu0 0.0
    %912 = vmatprep.mubr.f32.mxu0 0.0
    %913 = vmatmul.mubr.f32.gmra.mrb[0].mxu0 %v846
    %v914 = vpop.f32.mrb[0].mxu0
    %v915 = vadd.f32 %v844, %v914
    %v916 = vpop.f32.mrb[0].mxu0
    %917 = vdwg.mxu0
    %v918 = vtanh.pop %v915
    %919 = vst.msk [vmem:[%s843] sm:$0xff] %vm291, %v918
    %v920 = vld [vmem:[#allocation2] sm:$0xff]
    %v921 = vld [vmem:[#allocation2 + $0x8] sm:$0xff]
    %v922 = vld [vmem:[#allocation2 + $0x10] sm:$0xff]
    %v923 = vld [vmem:[#allocation2 + $0x18] sm:$0xff]
    %v924 = vld [vmem:[#allocation2 + $0x20] sm:$0xff]
    %v925 = vld [vmem:[#allocation2 + $0x28] sm:$0xff]
    %v926 = vld [vmem:[#allocation2 + $0x30] sm:$0xff]
    %v927 = vld [vmem:[#allocation2 + $0x38] sm:$0xff]
    %v928 = vld [vmem:[%s7] sm:$0xff]
    %v929 = vld [vmem:[%s7 + $0x8] sm:$0xff]
    %v930 = vld [vmem:[%s7 + $0x10] sm:$0xff]
    %v931 = vld [vmem:[%s7 + $0x18] sm:$0xff]
    %v932 = vld [vmem:[%s8] sm:$0x1]
    %v934 = vlaneseq
    %v935 = vshrl.u32 %v934, 7
    %v936 = vsub.s32 0, %v935
    %v937 = vrot.slane %v932, %v936
    %v940 = vsel %vm291, %v920, 0
    %v943 = vsel %vm291, %v921, 0
    %v946 = vsel %vm291, %v922, 0
    %v949 = vsel %vm291, %v923, 0
    %v952 = vsel %vm291, %v924, 0
    %v955 = vsel %vm291, %v925, 0
    %v958 = vsel %vm291, %v926, 0
    %v961 = vsel %vm291, %v927, 0
    %963 = vmatprep.subr.mxu0 0.0
    %964 = vmatpush1.msra.mxu0 %v928
    %965 = vmatprep.subr.mxu0 0.0
    %966 = vmatpush1.msra.mxu0 %v929
    %967 = vmatprep.subr.mxu0 0.0
    %968 = vmatpush1.msra.mxu0 %v930
    %969 = vmatprep.subr.mxu0 0.0
    %970 = vmatpush1.msra.mxu0 %v931
    %971 = vmatprep.subr.mxu0 0.0
    %972 = vmatpush1.msra.mxu0 0.0
    %973 = vmatprep.subr.mxu0 0.0
    %974 = vmatpush1.msra.mxu0 0.0
    %975 = vmatprep.subr.mxu0 0.0
    %976 = vmatpush1.msra.mxu0 0.0
    %977 = vmatprep.subr.mxu0 0.0
    %978 = vmatpush1.msra.mxu0 0.0
    %979 = vmatprep.subr.mxu0 0.0
    %980 = vmatpush1.msra.mxu0 0.0
    %981 = vmatprep.subr.mxu0 0.0
    %982 = vmatpush1.msra.mxu0 0.0
    %983 = vmatprep.subr.mxu0 0.0
    %984 = vmatpush1.msra.mxu0 0.0
    %985 = vmatprep.subr.mxu0 0.0
    %986 = vmatpush1.msra.mxu0 0.0
    %987 = vmatprep.subr.mxu0 0.0
    %988 = vmatpush1.msra.mxu0 0.0
    %989 = vmatprep.subr.mxu0 0.0
    %990 = vmatpush1.msra.mxu0 0.0
    %991 = vmatprep.subr.mxu0 0.0
    %992 = vmatpush1.msra.mxu0 0.0
    %993 = vmatprep.subr.mxu0 0.0
    %994 = vmatpush1.msra.mxu0 0.0
    %995 = vmatprep.subr.mxu0 0.0
    %996 = vmatpush1.msra.mxu0 0.0
    %997 = vmatprep.subr.mxu0 0.0
    %998 = vmatpush1.msra.mxu0 0.0
    %999 = vmatprep.subr.mxu0 0.0
    %1000 = vmatpush1.msra.mxu0 0.0
    %1001 = vmatprep.subr.mxu0 0.0
    %1002 = vmatpush1.msra.mxu0 0.0
    %1003 = vmatprep.subr.mxu0 0.0
    %1004 = vmatpush1.msra.mxu0 0.0
    %1005 = vmatprep.subr.mxu0 0.0
    %1006 = vmatpush1.msra.mxu0 0.0
    %1007 = vmatprep.subr.mxu0 0.0
    %1008 = vmatpush1.msra.mxu0 0.0
    %1009 = vmatprep.subr.mxu0 0.0
    %1010 = vmatpush1.msra.mxu0 0.0
    %1011 = vmatprep.subr.mxu0 0.0
    %1012 = vmatpush1.msra.mxu0 0.0
    %1013 = vmatprep.subr.mxu0 0.0
    %1014 = vmatpush1.msra.mxu0 0.0
    %1015 = vmatprep.subr.mxu0 0.0
    %1016 = vmatpush1.msra.mxu0 0.0
    %1017 = vmatprep.subr.mxu0 0.0
    %1018 = vmatpush1.msra.mxu0 0.0
    %1019 = vmatprep.subr.mxu0 0.0
    %1020 = vmatpush1.msra.mxu0 0.0
    %1021 = vmatprep.subr.mxu0 0.0
    %1022 = vmatpush1.msra.mxu0 0.0
    %1023 = vmatprep.subr.mxu0 0.0
    %1024 = vmatpush1.msra.mxu0 0.0
    %1025 = vmatprep.subr.mxu0 0.0
    %1026 = vmatpush1.msra.mxu0 0.0
    %1027 = vmatprep.mubr.f32.mxu0 0.0
    %1028 = vmatmul.mubr.f32.gmra.mrb[0].mxu0 %v940
    %v1029 = vpop.f32.mrb[0].mxu0
    %v1030 = vadd.f32 %v937, %v1029
    %v1031 = vpop.f32.mrb[0].mxu0
    %1032 = vmatprep.mubr.f32.mxu0 0.0
    %1033 = vmatmul.mubr.f32.gmra.mrb[0].mxu0 %v943
    %v1034 = vpop.f32.mrb[0].mxu0
    %v1035 = vadd.f32 %v937, %v1034
    %v1036 = vpop.f32.mrb[0].mxu0
    %1037 = vmatprep.mubr.f32.mxu0 0.0
    %1038 = vmatmul.mubr.f32.gmra.mrb[0].mxu0 %v946
    %v1039 = vpop.f32.mrb[0].mxu0
    %v1040 = vadd.f32 %v937, %v1039
    %v1041 = vpop.f32.mrb[0].mxu0
    %1042 = vmatprep.mubr.f32.mxu0 0.0
    %1043 = vmatmul.mubr.f32.gmra.mrb[0].mxu0 %v949
    %v1044 = vpop.f32.mrb[0].mxu0
    %v1045 = vadd.f32 %v937, %v1044
    %v1046 = vpop.f32.mrb[0].mxu0
    %1047 = vmatprep.mubr.f32.mxu0 0.0
    %1048 = vmatmul.mubr.f32.gmra.mrb[0].mxu0 %v952
    %v1049 = vpop.f32.mrb[0].mxu0
    %v1050 = vadd.f32 %v937, %v1049
    %v1051 = vpop.f32.mrb[0].mxu0
    %1052 = vmatprep.mubr.f32.mxu0 0.0
    %1053 = vmatmul.mubr.f32.gmra.mrb[0].mxu0 %v955
    %v1054 = vpop.f32.mrb[0].mxu0
    %v1055 = vadd.f32 %v937, %v1054
    %v1056 = vpop.f32.mrb[0].mxu0
    %1057 = vmatprep.mubr.f32.mxu0 0.0
    %1058 = vmatmul.mubr.f32.gmra.mrb[0].mxu0 %v958
    %v1059 = vpop.f32.mrb[0].mxu0
    %v1060 = vadd.f32 %v937, %v1059
    %v1061 = vpop.f32.mrb[0].mxu0
    %1062 = vmatprep.mubr.f32.mxu0 0.0
    %1063 = vmatmul.mubr.f32.gmra.mrb[0].mxu0 %v961
    %v1064 = vpop.f32.mrb[0].mxu0
    %v1065 = vadd.f32 %v937, %v1064
    %v1066 = vpop.f32.mrb[0].mxu0
    %1067 = vdwg.mxu0
    %1068 = vst [vmem:[#allocation8] sm:$0xff] %v1030
    %1069 = vst [vmem:[#allocation8 + $0x8] sm:$0xff] %v1035
    %1070 = vst [vmem:[#allocation8 + $0x10] sm:$0xff] %v1040
    %1071 = vst [vmem:[#allocation8 + $0x18] sm:$0xff] %v1045
    %1072 = vst [vmem:[#allocation8 + $0x20] sm:$0xff] %v1050
    %1073 = vst [vmem:[#allocation8 + $0x28] sm:$0xff] %v1055
    %1074 = vst [vmem:[#allocation8 + $0x30] sm:$0xff] %v1060
    %1075 = vst [vmem:[#allocation8 + $0x38] sm:$0xff] %v1065
    %1076 = vst.msk [vmem:[#allocation9] sm:$0xff] %vm291, %v918
    // Predicated region
    $region46: #{tpu_custom_call.1} parent=1 // pred_check
      _
    $region47: #{tpu_custom_call.1} parent=1 // pred_check_branch
      %1078 = sbr.rel (0) target = $region49
    $region48: #{tpu_custom_call.1} parent=1 // pred_region
      %s1080 = ssub.s32 1024, 1024
      %1081 = vsyncadd [#allocation5], %s1080
      %s1082 = sshll.u32 [#allocation8], 4
      %s1083 = int_to_ptr.vmem [resolvable:$true] %s1082
      %1088 = dma.vmem_to_hbm [thread:$0]  %s1083, 1024, %s9, [#allocation5], 128, 128, 8
    $region49: #{tpu_custom_call.1} parent=1 // pred_fallthru
      _
    // Predicated region
    $region50: #{tpu_custom_call.1} parent=1 // pred_check
      _
    $region51: #{tpu_custom_call.1} parent=1 // pred_check_branch
      %1090 = sbr.rel (0) target = $region53
    $region52: #{tpu_custom_call.1} parent=1 // pred_region
      %s1092 = ssub.s32 128, 128
      %1093 = vsyncadd [#allocation10], %s1092
      %s1095 = sshll.u32 [#allocation9], 4
      %s1096 = int_to_ptr.vmem [resolvable:$true] %s1095
      %1098 = dma.vmem_to_hbm [thread:$0]  %s1096, 128, %s10, [#allocation10]
    $region53: #{tpu_custom_call.1} parent=1 // pred_fallthru
      _
    // Predicated region
    $region54: #{tpu_custom_call.1} parent=1 // pred_check
      _
    $region55: #{tpu_custom_call.1} parent=1 // pred_check_branch
      %1100 = sbr.rel (0) target = $region57
    $region56: #{tpu_custom_call.1} parent=1 // pred_region
      %1101 = dma.done [#allocation5], 1024
    $region57: #{tpu_custom_call.1} parent=1 // pred_fallthru
      _
    // Predicated region
    $region58: #{tpu_custom_call.1} parent=1 // pred_check
      _
    $region59: #{tpu_custom_call.1} parent=1 // pred_check_branch
      %1103 = sbr.rel (0) target = $region61
    $region60: #{tpu_custom_call.1} parent=1 // pred_region
      %1104 = dma.done [#allocation10], 128
    $region61: #{tpu_custom_call.1} parent=1 // pred_fallthru
      _
    %1105 = vsyncpa [#allocation4], 1
    %1106 = vsyncpa [#allocation7], 1
    %1107 = vsyncpa [#allocation5], 1
    %1108 = vsyncpa [#allocation10], 1

</llo_original>
